<compile_context>
chip_gen: v7x
topology: tpu7x:2x2x1
jax: 0.10.0
libtpu: 0.0.40
codegen_flags: <defaults>
</compile_context>

<pallas_src>
import functools
import math

import jax
import jax.numpy as jnp
from jax.experimental import pallas as pl
from jax.experimental.pallas import tpu as pltpu


# ---------------------------------------------------------------------------
# helpers
# ---------------------------------------------------------------------------
def _pick_tile(n, target, align):
    """Largest tile <= target that divides n and is a multiple of `align`;
    falls back to the full extent (always layout-legal)."""
    t = min(target, n)
    t -= t % align
    while t >= align:
        if n % t == 0:
            return t
        t -= align
    # TODO(synk): for large non-factorable N, pad to a tileable size instead of
    # falling back to the full extent (VMEM blow-up risk, esp. v7x 64 MiB).
    return n


def build_norm_adjacency(edge_index, edge_weight, num_nodes, dtype=jnp.float32):
    """deg/norm computation + dense scatter (sparse glue kept in plain JAX).
    Mirrors the PyTorch code: deg from `col` only, applied to both endpoints.
    Duplicate edges are scatter-summed (required)."""
    row, col = edge_index[0], edge_index[1]
    deg = jnp.zeros((num_nodes,), dtype).at[col].add(1.0)
    deg_inv = jnp.where(deg > 0, deg ** -0.5, 0.0)              # inf -> 0
    norm = deg_inv[row] * deg_inv[col] * edge_weight.astype(dtype)
    A = jnp.zeros((num_nodes, num_nodes), dtype).at[col, row].add(norm)
    return A


# ---------------------------------------------------------------------------
# kernel 1: fused QKV projection (bf16 MXU operands, f32 accumulate)
#           outputs: relu(Q) [N,F] bf16  and merged K|V [N,2F] bf16
# ---------------------------------------------------------------------------
def _qkv_proj_kernel(x_ref, w_ref, b_ref, q_ref, kv_ref):
    F = q_ref.shape[-1]
    y = jnp.dot(x_ref[...].astype(jnp.bfloat16), w_ref[...],
                preferred_element_type=jnp.float32) + b_ref[...]   # [ti, 3F] f32
    q_ref[...] = jnp.maximum(y[:, :F], 0.0).astype(q_ref.dtype)    # relu(Q)
    kv_ref[...] = y[:, F:].astype(kv_ref.dtype)                    # K | V


def qkv_projection(x, w_all, b_all, *, tile_rows):
    N, F = x.shape
    grid = (N // tile_rows,)
    return pl.pallas_call(
        _qkv_proj_kernel,
        out_shape=(jax.ShapeDtypeStruct((N, F), jnp.bfloat16),
                   jax.ShapeDtypeStruct((N, 2 * F), jnp.bfloat16)),
        grid_spec=pltpu.PrefetchScalarGridSpec(
            num_scalar_prefetch=0,
            grid=grid,
            in_specs=[pl.BlockSpec((tile_rows, F), lambda i: (i, 0)),
                      pl.BlockSpec((F, 3 * F), lambda i: (0, 0)),
                      pl.BlockSpec((1, 3 * F), lambda i: (0, 0))],
            out_specs=(pl.BlockSpec((tile_rows, F), lambda i: (i, 0)),
                       pl.BlockSpec((tile_rows, 2 * F), lambda i: (i, 0)))),
        compiler_params=pltpu.CompilerParams(
            dimension_semantics=("parallel",),
            vmem_limit_bytes=32 * 1024 * 1024),
    )(x, w_all, b_all)


# ---------------------------------------------------------------------------
# kernel 2: generic tiled matmul for the A-power chain (bf16 end-to-end,
#           f32 accumulation)
# ---------------------------------------------------------------------------
def _matmul_kernel(a_ref, b_ref, o_ref, acc_ref):
    @pl.when(pl.program_id(2) == 0)
    def _init():
        acc_ref[...] = jnp.zeros_like(acc_ref)

    acc_ref[...] += jnp.dot(a_ref[...], b_ref[...],
                            preferred_element_type=jnp.float32)

    @pl.when(pl.program_id(2) == pl.num_programs(2) - 1)
    def _store():
        o_ref[...] = acc_ref[...].astype(o_ref.dtype)


def tiled_matmul(a, b, *, tm, tn, tk, out_dtype=jnp.bfloat16):
    M, K = a.shape
    _, N = b.shape
    grid = (M // tm, N // tn, K // tk)
    return pl.pallas_call(
        _matmul_kernel,
        out_shape=jax.ShapeDtypeStruct((M, N), out_dtype),
        grid_spec=pltpu.PrefetchScalarGridSpec(
            num_scalar_prefetch=0,
            grid=grid,
            in_specs=[pl.BlockSpec((tm, tk), lambda i, j, k: (i, k)),
                      pl.BlockSpec((tk, tn), lambda i, j, k: (k, j))],
            out_specs=pl.BlockSpec((tm, tn), lambda i, j, k: (i, j)),
            scratch_shapes=[pltpu.VMEM((tm, tn), jnp.float32)]),
        compiler_params=pltpu.CompilerParams(
            dimension_semantics=("parallel", "parallel", "arbitrary"),
            vmem_limit_bytes=32 * 1024 * 1024),
    )(a, b)


# ---------------------------------------------------------------------------
# kernel 3: multi-hop attention (row tiles "parallel" x col-tile reduction)
# ---------------------------------------------------------------------------
def mstagnn_attn_kernel(q_ref, kvc_ref, kvr_ref, p_ref, maskv_ref, hopwise_ref,
                        out_ref, acc_ref, s_ref, *, num_heads, head_dim, k_hops):
    F = q_ref.shape[-1]
    j = pl.program_id(1)

    @pl.when(j == 0)
    def _init():
        acc_ref[...] = jnp.zeros_like(acc_ref)

    kv = kvc_ref[...]                                   # [tj, 2F] bf16 (col block)
    maskv = maskv_ref[...]                              # [H*tj, F] bf16 0/1 blockdiag

    # Block-diagonal K / V slabs, built once per column step (lane-dense).
    kblk = jnp.tile(kv[:, :F], (num_heads, 1)) * maskv  # blockdiag(K_h) [H*tj, F]
    vblk = jnp.tile(kv[:, F:], (num_heads, 1)) * maskv  # blockdiag(V_h) [H*tj, F]

    # Fused score slab: S[:, h*tj:(h+1)*tj] = Q_h . K_h  -- one MXU matmul.
    # f32 accumulation, stored bf16 once -> bf16 VPU elementwise in hop loop.
    s_ref[...] = jax.lax.dot_general(
        q_ref[...], kblk, (((1,), (1,)), ((), ())),
        preferred_element_type=jnp.float32).astype(jnp.bfloat16)

    # Hop loop: acc[t] += (A^(t+1)[i,j] * S) @ blockdiag(V_h)
    # -> one lane-dense [ti, F] accumulate per hop.
    for t in range(k_hops):
        ps = jnp.tile(p_ref[t], (1, num_heads)) * s_ref[...]     # [ti, H*tj] bf16
        acc_ref[t] = acc_ref[t] + jnp.dot(ps, vblk,
                                          preferred_element_type=jnp.float32)

    @pl.when(j == pl.num_programs(1) - 1)
    def _finalize():
        # Block-diagonal-of-ones: one tiny MXU matmul broadcasts each head's
        # squared norm across its head_dim lanes (no XLU reductions/concats).
        ri = jax.lax.broadcasted_iota(jnp.int32, (F, F), 0) // head_dim
        ci = jax.lax.broadcasted_iota(jnp.int32, (F, F), 1) // head_dim
        bones = (ri == ci).astype(jnp.bfloat16)
        inv_d = 1.0 / float(head_dim)

        vi = kvr_ref[:, F:].astype(jnp.float32)                  # V of the row tile
        hid = hopwise_ref[0] * vi                                # hopwise[0] * V
        for t in range(k_hops):
            ht = acc_ref[t]                                      # [ti, F] f32
            nrm2 = jnp.dot((ht * ht).astype(jnp.bfloat16), bones,
                           preferred_element_type=jnp.float32)   # per-head sumsq
            nrm = jnp.sqrt(nrm2 * inv_d)                         # ||H_h|| / sqrt(D)
            # gamma / max(1, ||H||/sqrt(D)) -- exact division; finalize runs
            # once per row tile so the approx-reciprocal bias is not worth it.
            scale = hopwise_ref[t + 1] / jnp.maximum(nrm, 1.0)
            hid = hid + ht * scale
        out_ref[...] = hid.astype(out_ref.dtype)


# ---------------------------------------------------------------------------
# wrapper
# ---------------------------------------------------------------------------
def mstagnn_forward(x, edge_index, edge_weight, params, *, num_heads, k_hops,
                    tile_rows=128, tile_cols=256):
    Wq, bq, Wk, bk, Wv, bv, hopwise = params
    N, F = x.shape
    head_dim = F // num_heads

    # Dense normalized adjacency (sparse scatter glue in plain JAX), bf16 once.
    A = build_norm_adjacency(edge_index, edge_weight, N, jnp.float32)
    A_bf = A.astype(jnp.bfloat16)

    # Attention tiles: rows multiple of 16 (bf16 sublane packing) or full;
    # cols multiple of 128 or full.  Defaults keep >=2 row tiles at moderate N
    # so the "parallel" axis shards across v7x's 2 TensorCores; sweep
    # tile_rows/tile_cols up to 256/512 on v6e/v7x for large graphs.
    ti = _pick_tile(N, tile_rows, 16)
    tj = _pick_tile(N, tile_cols, 128)

    # Power-chain tiles: 256-wide output tiles fill the 256x256 MXU on
    # v6e/v7x; chain is bf16 end-to-end (identical numerics to casting the
    # operands in-kernel, half the HBM traffic of the O(K*N^3) chain).
    tm_p = _pick_tile(N, 256, 16)
    tn_p = _pick_tile(N, 256, 128)
    tk_p = _pick_tile(N, 512, 128)

    # Hop operators P_t = A^(t+1) via a running power, HBM-resident; the
    # attention kernel only ever sees (k_hops, ti, tj) tiles of them.
    powers = [A_bf]
    for _ in range(1, k_hops):
        powers.append(tiled_matmul(A_bf, powers[-1], tm=tm_p, tn=tn_p, tk=tk_p,
                                   out_dtype=jnp.bfloat16))
    p_stack = jnp.stack(powers, axis=0)                          # [K, N, N] bf16

    # Fused QKV projection (merged weight / bias blocks; Q and K|V outputs).
    w_all = jnp.concatenate([Wq.T, Wk.T, Wv.T], axis=1).astype(jnp.bfloat16)
    b_all = jnp.concatenate([bq, bk, bv])[None, :].astype(jnp.float32)
    q, kv = qkv_projection(x, w_all, b_all, tile_rows=ti)

    # 0/1 block-diagonal mask shared by the K and V slabs:
    #   mask[r, c] = 1  iff  (r // tj) == (c // head_dim)
    hw = num_heads * tj
    maskv = (jnp.arange(hw)[:, None] // tj ==
             jnp.arange(F)[None, :] // head_dim).astype(jnp.bfloat16)

    kernel = functools.partial(mstagnn_attn_kernel, num_heads=num_heads,
                               head_dim=head_dim, k_hops=k_hops)
    grid = (N // ti, N // tj)
    return pl.pallas_call(
        kernel,
        out_shape=jax.ShapeDtypeStruct((N, F), jnp.float32),
        grid_spec=pltpu.PrefetchScalarGridSpec(
            num_scalar_prefetch=0,
            grid=grid,
            in_specs=[
                pl.BlockSpec((ti, F), lambda i, j: (i, 0)),              # Q rows
                pl.BlockSpec((tj, 2 * F), lambda i, j: (j, 0)),          # K|V cols
                pl.BlockSpec((ti, 2 * F), lambda i, j: (i, 0)),          # K|V rows (V init)
                # NOTE: if tj is enlarged further and the P DMA becomes
                # exposed, add pipeline_mode=pl.Buffered(3) to this spec.
                pl.BlockSpec((k_hops, ti, tj), lambda i, j: (0, i, j)),  # hop operators
                pl.BlockSpec((num_heads * tj, F), lambda i, j: (0, 0)),  # blockdiag mask
                pl.BlockSpec(memory_space=pltpu.MemorySpace.SMEM),       # hopwise
            ],
            out_specs=pl.BlockSpec((ti, F), lambda i, j: (i, 0)),
            scratch_shapes=[pltpu.VMEM((k_hops, ti, F), jnp.float32),        # hop acc
                            pltpu.VMEM((ti, num_heads * tj), jnp.bfloat16)]  # score slab
        ),
        compiler_params=pltpu.CompilerParams(
            dimension_semantics=("parallel", "arbitrary"),
            vmem_limit_bytes=32 * 1024 * 1024),
    )(q, kv, kv, p_stack, maskv, hopwise.astype(jnp.float32))


# ---------------------------------------------------------------------------
# params / reference
# ---------------------------------------------------------------------------
def init_params(key, hidden_dim, k_hops):
    """Deterministic synthetic init matching nn.Linear / nn.Parameter shapes."""
    ks = jax.random.split(key, 6)
    bound = 1.0 / math.sqrt(hidden_dim)

    def lin(kw, kb):
        W = jax.random.uniform(kw, (hidden_dim, hidden_dim), jnp.float32, -bound, bound)
        b = jax.random.uniform(kb, (hidden_dim,), jnp.float32, -bound, bound)
        return W, b

    Wq, bq = lin(ks[0], ks[1])
    Wk, bk = lin(ks[2], ks[3])
    Wv, bv = lin(ks[4], ks[5])
    hopwise = jnp.ones((k_hops + 1,), jnp.float32)               # torch.ones(K + 1)
    return Wq, bq, Wk, bk, Wv, bv, hopwise


def reference_forward(x, A, params, num_heads, k_hops):
    """Pure-JAX (f32) mirror of the PyTorch forward (edge_feature=None)."""
    Wq, bq, Wk, bk, Wv, bv, hopwise = params
    N, F = x.shape
    D = F // num_heads
    Q = jax.nn.relu(x @ Wq.T + bq).reshape(N, num_heads, D)
    Km = (x @ Wk.T + bk).reshape(N, num_heads, D)
    V = (x @ Wv.T + bv).reshape(N, num_heads, D)
    hidden = V * hopwise[0]
    M = Km[:, :, :, None] * V[:, :, None, :]                     # K (x) V [N,H,D,D]
    for hop in range(k_hops):
        M = jnp.einsum('ij,jhab->ihab', A, M)                    # propagate
        H = jnp.einsum('nhi,nhij->nhj', Q, M)
        nrm = jnp.linalg.norm(H / math.sqrt(D), axis=-1)
        H = H / jnp.maximum(1.0, nrm)[..., None]
        hidden = hidden + hopwise[hop + 1] * H
    return hidden.reshape(N, F)


# ---------------------------------------------------------------------------
# demo / self-test
# ---------------------------------------------------------------------------
if __name__ == "__main__":
    hidden_dim, num_heads, k_hops = 32, 4, 3

    # (N=256 exercises the multi-tile grid / reduction path; N=16 exercises
    #  the full-extent degenerate tiles.)
    for num_nodes, num_edges in ((256, 1024), (16, 48)):
        key = jax.random.PRNGKey(0)
        kx, kr, kc, kw, kp = jax.random.split(key, 5)
        x = jax.random.normal(kx, (num_nodes, hidden_dim), jnp.float32)
        row = jax.random.randint(kr, (num_edges,), 0, num_nodes)
        col = jax.random.randint(kc, (num_edges,), 0, num_nodes)
        edge_index = jnp.stack([row, col], axis=0)
        edge_weight = jax.random.uniform(kw, (num_edges,), jnp.float32, 0.5, 1.5)
        params = init_params(kp, hidden_dim, k_hops)

        out = mstagnn_forward(x, edge_index, edge_weight, params,
                              num_heads=num_heads, k_hops=k_hops)
        out = jax.block_until_ready(out)

        A = build_norm_adjacency(edge_index, edge_weight, num_nodes)
        ref = reference_forward(x, A, params, num_heads, k_hops)
        max_err = float(jnp.max(jnp.abs(out - ref)))
        # bf16 MXU operands + bf16-stored scores/powers (f32 accumulation)
        # -> slightly looser tolerance than a pure-f32 kernel.
        assert jnp.allclose(out, ref, rtol=6e-2, atol=6e-2), \
            f"N={num_nodes} max_err={max_err}"

    print("KERNEL_OK")
</pallas_src>

<mosaic_0001>
module attributes {stable_mosaic.version = 11 : i64} {
  func.func @_matmul_kernel(%arg0: i32, %arg1: i32, %arg2: i32, %arg3: memref<256x256xbf16, #tpu.memory_space<vmem>>, %arg4: memref<256x256xbf16, #tpu.memory_space<vmem>>, %arg5: memref<256x256xbf16, #tpu.memory_space<vmem>>, %arg6: memref<256x256xf32, #tpu.memory_space<vmem>>) attributes {dimension_semantics = [#tpu.dimension_semantics<parallel>, #tpu.dimension_semantics<parallel>, #tpu.dimension_semantics<arbitrary>], iteration_bounds = array<i64: 1, 1, 1>, scalar_prefetch = 0 : i64, scratch_operands = 1 : i64, tpu.core_type = #tpu.core_type<tc>, window_params = [{transform_indices = @transform_0, window_bounds = array<i64: 256, 256>}, {transform_indices = @transform_1, window_bounds = array<i64: 256, 256>}, {transform_indices = @transform_2, window_bounds = array<i64: 256, 256>}]} {
    %c0_i32 = arith.constant 0 : i32
    %0 = arith.cmpi eq, %arg2, %c0_i32 : i32
    %1 = arith.extui %0 : i1 to i32
    %c0_i32_0 = arith.constant 0 : i32
    %2 = arith.cmpi ne, %1, %c0_i32_0 : i32
    scf.if %2 {
      %cst_10 = arith.constant 0.000000e+00 : f32
      %12 = vector.broadcast %cst_10 : f32 to vector<256x256xf32>
      %c0_11 = arith.constant 0 : index
      %c0_12 = arith.constant 0 : index
      %13 = vector.load %arg6[%c0_11, %c0_12] : memref<256x256xf32, #tpu.memory_space<vmem>>, vector<256x256xf32>
      tpu.vector_store %arg6[%c0_11, %c0_12], %12 {strides = array<i32>} : memref<256x256xf32, #tpu.memory_space<vmem>>, vector<256x256xf32>,
    } else {
    }
    %c0 = arith.constant 0 : index
    %c0_1 = arith.constant 0 : index
    %3 = vector.load %arg6[%c0, %c0_1] : memref<256x256xf32, #tpu.memory_space<vmem>>, vector<256x256xf32>
    %c0_2 = arith.constant 0 : index
    %c0_3 = arith.constant 0 : index
    %4 = vector.load %arg3[%c0_2, %c0_3] : memref<256x256xbf16, #tpu.memory_space<vmem>>, vector<256x256xbf16>
    %c0_4 = arith.constant 0 : index
    %c0_5 = arith.constant 0 : index
    %5 = vector.load %arg4[%c0_4, %c0_5] : memref<256x256xbf16, #tpu.memory_space<vmem>>, vector<256x256xbf16>
    %cst = arith.constant dense<0.000000e+00> : vector<256x256xf32>
    %6 = tpu.matmul %4, %5, %cst {dimension_numbers = #tpu.dot_dimension_numbers<[1], [0], [0], [1], [0, 0, 1, 1], [], []>} : vector<256x256xbf16>, vector<256x256xbf16>, vector<256x256xf32> -> vector<256x256xf32>
    %7 = arith.addf %3, %6 : vector<256x256xf32>
    %c0_6 = arith.constant 0 : index
    %c0_7 = arith.constant 0 : index
    %8 = vector.load %arg6[%c0_6, %c0_7] : memref<256x256xf32, #tpu.memory_space<vmem>>, vector<256x256xf32>
    tpu.vector_store %arg6[%c0_6, %c0_7], %7 {strides = array<i32>} : memref<256x256xf32, #tpu.memory_space<vmem>>, vector<256x256xf32>,
    %c0_i32_8 = arith.constant 0 : i32
    %9 = arith.cmpi eq, %arg2, %c0_i32_8 : i32
    %10 = arith.extui %9 : i1 to i32
    %c0_i32_9 = arith.constant 0 : i32
    %11 = arith.cmpi ne, %10, %c0_i32_9 : i32
    scf.if %11 {
      %c0_10 = arith.constant 0 : index
      %c0_11 = arith.constant 0 : index
      %12 = vector.load %arg6[%c0_10, %c0_11] : memref<256x256xf32, #tpu.memory_space<vmem>>, vector<256x256xf32>
      %13 = arith.truncf %12 : vector<256x256xf32> to vector<256x256xbf16>
      %c0_12 = arith.constant 0 : index
      %c0_13 = arith.constant 0 : index
      %14 = vector.load %arg5[%c0_12, %c0_13] : memref<256x256xbf16, #tpu.memory_space<vmem>>, vector<256x256xbf16>
      tpu.vector_store %arg5[%c0_12, %c0_13], %13 {strides = array<i32>} : memref<256x256xbf16, #tpu.memory_space<vmem>>, vector<256x256xbf16>,
    } else {
    }
    return
  }
  func.func @transform_0(%arg0: i32, %arg1: i32, %arg2: i32) -> (i32, i32) {
    %c0_i32 = arith.constant 0 : i32
    return %arg0, %arg2 : i32, i32
  }
  func.func @transform_1(%arg0: i32, %arg1: i32, %arg2: i32) -> (i32, i32) {
    %c0_i32 = arith.constant 0 : i32
    return %arg2, %arg1 : i32, i32
  }
  func.func @transform_2(%arg0: i32, %arg1: i32, %arg2: i32) -> (i32, i32) {
    %c0_i32 = arith.constant 0 : i32
    return %arg0, %arg1 : i32, i32
  }
}

</mosaic_0001>

<llo_original>
// kernel: tpu_custom_call.1
$region0: #{tpu_custom_call.1}
  #allocation0 [shape = 'u32[]', space=smem, size = 0x4, offset = 0x4, fixed_abs, tag = 'smem constant byte address 0x4 - core index']
  #allocation1 [shape = 'u32[144,128]{1,0:T(1,128)}', space=vmem, size = 0x12000, scoped, tag = 'internal scratch']
  #allocation2 [shape = 'f32[256,256]{1,0:T(8,128)}', space=vmem, size = 0x40000, scoped, tag = 'scratch operand']
  %s0 = inlined_call_operand.hbm [shape: bf16[256,256], index: 0, kind: input, shape index: {}]
  %s1 = inlined_call_operand.hbm [shape: bf16[256,256], index: 1, kind: input, shape index: {}]
  %s2 = inlined_call_operand.hbm [shape: bf16[256,256], index: 2, kind: output, shape index: {}]
  %s3 = sld [smem:[#allocation0]]
  $region34: #{tpu_custom_call.1} parent=0
    _
  %s5 = ssub.s32 1, %s3
  %s6 = scalar_select 0, %s5, %s3
  $region1: #{tpu_custom_call.1} parent=0
    #allocation3 [shape = 'u8[131072]{0}', space=vmem, size = 0x20000, scoped, tag = 'input window, operand 0, single buffered']
    #allocation4 [shape = 's32[1]{0}', space=sflag, size = 0x4, scoped, tag = 'scoped memory for tpu_custom_call.1']
    #allocation5 [shape = 's32[1]{0}', space=sflag, size = 0x4, scoped, tag = 'scoped memory for tpu_custom_call.1']
    #allocation6 [shape = 'u8[131072]{0}', space=vmem, size = 0x20000, scoped, tag = 'input window, operand 1, single buffered']
    #allocation7 [shape = 's32[1]{0}', space=sflag, size = 0x4, scoped, tag = 'scoped memory for tpu_custom_call.1']
    #allocation8 [shape = 'u8[131072]{0}', space=vmem, size = 0x20000, scoped, tag = 'output window, operand 0, single buffered']
    %7 = vsyncpa [#allocation4], 0
    %8 = vsyncpa [#allocation7], 0
    %9 = vsyncpa [#allocation5], 0
    // Predicated region
    $region2: #{tpu_custom_call.1} parent=1 // pred_check
      _
    $region3: #{tpu_custom_call.1} parent=1 // pred_check_branch
      %11 = sbr.rel (0) target = $region5
    $region4: #{tpu_custom_call.1} parent=1 // pred_region
      %s13 = ssub.s32 4096, 4096
      %14 = vsyncadd [#allocation4], %s13
      %s15 = sshll.u32 [#allocation3], 4
      %s16 = int_to_ptr.vmem [resolvable:$true] %s15
      %21 = dma.hbm_to_vmem [thread:$0]  %s0, 4096, %s16, [#allocation4], 128, 128, 8
    $region5: #{tpu_custom_call.1} parent=1 // pred_fallthru
      _
    // Predicated region
    $region6: #{tpu_custom_call.1} parent=1 // pred_check
      _
    $region7: #{tpu_custom_call.1} parent=1 // pred_check_branch
      %23 = sbr.rel (0) target = $region9
    $region8: #{tpu_custom_call.1} parent=1 // pred_region
      %s25 = ssub.s32 4096, 4096
      %26 = vsyncadd [#allocation7], %s25
      %s27 = sshll.u32 [#allocation6], 4
      %s28 = int_to_ptr.vmem [resolvable:$true] %s27
      %33 = dma.hbm_to_vmem [thread:$0]  %s1, 4096, %s28, [#allocation7], 128, 128, 8
    $region9: #{tpu_custom_call.1} parent=1 // pred_fallthru
      _
    // Predicated region
    $region10: #{tpu_custom_call.1} parent=1 // pred_check
      _
    $region11: #{tpu_custom_call.1} parent=1 // pred_check_branch
      %35 = sbr.rel (0) target = $region13
    $region12: #{tpu_custom_call.1} parent=1 // pred_region
      %36 = dma.done [#allocation4], 4096
    $region13: #{tpu_custom_call.1} parent=1 // pred_fallthru
      _
    // Predicated region
    $region14: #{tpu_custom_call.1} parent=1 // pred_check
      _
    $region15: #{tpu_custom_call.1} parent=1 // pred_check_branch
      %38 = sbr.rel (0) target = $region17
    $region16: #{tpu_custom_call.1} parent=1 // pred_region
      %39 = dma.done [#allocation7], 4096
    $region17: #{tpu_custom_call.1} parent=1 // pred_fallthru
      _
    %p40 = scmp.eq.s32.totalorder 0, 0
    // Predicated region
    $region18: #{tpu_custom_call.1} parent=1 // pred_check
      %p41 = pneg %p40
    $region19: #{tpu_custom_call.1} parent=1 // pred_check_branch
      %43 = sbr.rel (%p41) target = $region21
    $region20: #{tpu_custom_call.1} parent=1 // pred_region
      %44 = vst [vmem:[#allocation2] sm:$0xff] 0.0
      %45 = vst [vmem:[#allocation2 + $0x8] sm:$0xff] 0.0
      %46 = vst [vmem:[#allocation2 + $0x10] sm:$0xff] 0.0
      %47 = vst [vmem:[#allocation2 + $0x18] sm:$0xff] 0.0
      %48 = vst [vmem:[#allocation2 + $0x20] sm:$0xff] 0.0
      %49 = vst [vmem:[#allocation2 + $0x28] sm:$0xff] 0.0
      %50 = vst [vmem:[#allocation2 + $0x30] sm:$0xff] 0.0
      %51 = vst [vmem:[#allocation2 + $0x38] sm:$0xff] 0.0
      %52 = vst [vmem:[#allocation2 + $0x40] sm:$0xff] 0.0
      %53 = vst [vmem:[#allocation2 + $0x48] sm:$0xff] 0.0
      %54 = vst [vmem:[#allocation2 + $0x50] sm:$0xff] 0.0
      %55 = vst [vmem:[#allocation2 + $0x58] sm:$0xff] 0.0
      %56 = vst [vmem:[#allocation2 + $0x60] sm:$0xff] 0.0
      %57 = vst [vmem:[#allocation2 + $0x68] sm:$0xff] 0.0
      %58 = vst [vmem:[#allocation2 + $0x70] sm:$0xff] 0.0
      %59 = vst [vmem:[#allocation2 + $0x78] sm:$0xff] 0.0
      %60 = vst [vmem:[#allocation2 + $0x80] sm:$0xff] 0.0
      %61 = vst [vmem:[#allocation2 + $0x88] sm:$0xff] 0.0
      %62 = vst [vmem:[#allocation2 + $0x90] sm:$0xff] 0.0
      %63 = vst [vmem:[#allocation2 + $0x98] sm:$0xff] 0.0
      %64 = vst [vmem:[#allocation2 + $0xa0] sm:$0xff] 0.0
      %65 = vst [vmem:[#allocation2 + $0xa8] sm:$0xff] 0.0
      %66 = vst [vmem:[#allocation2 + $0xb0] sm:$0xff] 0.0
      %67 = vst [vmem:[#allocation2 + $0xb8] sm:$0xff] 0.0
      %68 = vst [vmem:[#allocation2 + $0xc0] sm:$0xff] 0.0
      %69 = vst [vmem:[#allocation2 + $0xc8] sm:$0xff] 0.0
      %70 = vst [vmem:[#allocation2 + $0xd0] sm:$0xff] 0.0
      %71 = vst [vmem:[#allocation2 + $0xd8] sm:$0xff] 0.0
      %72 = vst [vmem:[#allocation2 + $0xe0] sm:$0xff] 0.0
      %73 = vst [vmem:[#allocation2 + $0xe8] sm:$0xff] 0.0
      %74 = vst [vmem:[#allocation2 + $0xf0] sm:$0xff] 0.0
      %75 = vst [vmem:[#allocation2 + $0xf8] sm:$0xff] 0.0
      %76 = vst [vmem:[#allocation2 + $0x100] sm:$0xff] 0.0
      %77 = vst [vmem:[#allocation2 + $0x108] sm:$0xff] 0.0
      %78 = vst [vmem:[#allocation2 + $0x110] sm:$0xff] 0.0
      %79 = vst [vmem:[#allocation2 + $0x118] sm:$0xff] 0.0
      %80 = vst [vmem:[#allocation2 + $0x120] sm:$0xff] 0.0
      %81 = vst [vmem:[#allocation2 + $0x128] sm:$0xff] 0.0
      %82 = vst [vmem:[#allocation2 + $0x130] sm:$0xff] 0.0
      %83 = vst [vmem:[#allocation2 + $0x138] sm:$0xff] 0.0
      %84 = vst [vmem:[#allocation2 + $0x140] sm:$0xff] 0.0
      %85 = vst [vmem:[#allocation2 + $0x148] sm:$0xff] 0.0
      %86 = vst [vmem:[#allocation2 + $0x150] sm:$0xff] 0.0
      %87 = vst [vmem:[#allocation2 + $0x158] sm:$0xff] 0.0
      %88 = vst [vmem:[#allocation2 + $0x160] sm:$0xff] 0.0
      %89 = vst [vmem:[#allocation2 + $0x168] sm:$0xff] 0.0
      %90 = vst [vmem:[#allocation2 + $0x170] sm:$0xff] 0.0
      %91 = vst [vmem:[#allocation2 + $0x178] sm:$0xff] 0.0
      %92 = vst [vmem:[#allocation2 + $0x180] sm:$0xff] 0.0
      %93 = vst [vmem:[#allocation2 + $0x188] sm:$0xff] 0.0
      %94 = vst [vmem:[#allocation2 + $0x190] sm:$0xff] 0.0
      %95 = vst [vmem:[#allocation2 + $0x198] sm:$0xff] 0.0
      %96 = vst [vmem:[#allocation2 + $0x1a0] sm:$0xff] 0.0
      %97 = vst [vmem:[#allocation2 + $0x1a8] sm:$0xff] 0.0
      %98 = vst [vmem:[#allocation2 + $0x1b0] sm:$0xff] 0.0
      %99 = vst [vmem:[#allocation2 + $0x1b8] sm:$0xff] 0.0
      %100 = vst [vmem:[#allocation2 + $0x1c0] sm:$0xff] 0.0
      %101 = vst [vmem:[#allocation2 + $0x1c8] sm:$0xff] 0.0
      %102 = vst [vmem:[#allocation2 + $0x1d0] sm:$0xff] 0.0
      %103 = vst [vmem:[#allocation2 + $0x1d8] sm:$0xff] 0.0
      %104 = vst [vmem:[#allocation2 + $0x1e0] sm:$0xff] 0.0
      %105 = vst [vmem:[#allocation2 + $0x1e8] sm:$0xff] 0.0
      %106 = vst [vmem:[#allocation2 + $0x1f0] sm:$0xff] 0.0
      %107 = vst [vmem:[#allocation2 + $0x1f8] sm:$0xff] 0.0
    $region21: #{tpu_custom_call.1} parent=1 // pred_fallthru
      _
    %v108 = vld [vmem:[#allocation2] sm:$0xff]
    %v109 = vld [vmem:[#allocation2 + $0x8] sm:$0xff]
    %v110 = vld [vmem:[#allocation2 + $0x10] sm:$0xff]
    %v111 = vld [vmem:[#allocation2 + $0x18] sm:$0xff]
    %v112 = vld [vmem:[#allocation2 + $0x20] sm:$0xff]
    %v113 = vld [vmem:[#allocation2 + $0x28] sm:$0xff]
    %v114 = vld [vmem:[#allocation2 + $0x30] sm:$0xff]
    %v115 = vld [vmem:[#allocation2 + $0x38] sm:$0xff]
    %v116 = vld [vmem:[#allocation2 + $0x40] sm:$0xff]
    %v117 = vld [vmem:[#allocation2 + $0x48] sm:$0xff]
    %v118 = vld [vmem:[#allocation2 + $0x50] sm:$0xff]
    %v119 = vld [vmem:[#allocation2 + $0x58] sm:$0xff]
    %v120 = vld [vmem:[#allocation2 + $0x60] sm:$0xff]
    %v121 = vld [vmem:[#allocation2 + $0x68] sm:$0xff]
    %v122 = vld [vmem:[#allocation2 + $0x70] sm:$0xff]
    %v123 = vld [vmem:[#allocation2 + $0x78] sm:$0xff]
    %v124 = vld [vmem:[#allocation2 + $0x80] sm:$0xff]
    %v125 = vld [vmem:[#allocation2 + $0x88] sm:$0xff]
    %v126 = vld [vmem:[#allocation2 + $0x90] sm:$0xff]
    %v127 = vld [vmem:[#allocation2 + $0x98] sm:$0xff]
    %v128 = vld [vmem:[#allocation2 + $0xa0] sm:$0xff]
    %v129 = vld [vmem:[#allocation2 + $0xa8] sm:$0xff]
    %v130 = vld [vmem:[#allocation2 + $0xb0] sm:$0xff]
    %v131 = vld [vmem:[#allocation2 + $0xb8] sm:$0xff]
    %v132 = vld [vmem:[#allocation2 + $0xc0] sm:$0xff]
    %v133 = vld [vmem:[#allocation2 + $0xc8] sm:$0xff]
    %v134 = vld [vmem:[#allocation2 + $0xd0] sm:$0xff]
    %v135 = vld [vmem:[#allocation2 + $0xd8] sm:$0xff]
    %v136 = vld [vmem:[#allocation2 + $0xe0] sm:$0xff]
    %v137 = vld [vmem:[#allocation2 + $0xe8] sm:$0xff]
    %v138 = vld [vmem:[#allocation2 + $0xf0] sm:$0xff]
    %v139 = vld [vmem:[#allocation2 + $0xf8] sm:$0xff]
    %v140 = vld [vmem:[#allocation2 + $0x100] sm:$0xff]
    %v141 = vld [vmem:[#allocation2 + $0x108] sm:$0xff]
    %v142 = vld [vmem:[#allocation2 + $0x110] sm:$0xff]
    %v143 = vld [vmem:[#allocation2 + $0x118] sm:$0xff]
    %v144 = vld [vmem:[#allocation2 + $0x120] sm:$0xff]
    %v145 = vld [vmem:[#allocation2 + $0x128] sm:$0xff]
    %v146 = vld [vmem:[#allocation2 + $0x130] sm:$0xff]
    %v147 = vld [vmem:[#allocation2 + $0x138] sm:$0xff]
    %v148 = vld [vmem:[#allocation2 + $0x140] sm:$0xff]
    %v149 = vld [vmem:[#allocation2 + $0x148] sm:$0xff]
    %v150 = vld [vmem:[#allocation2 + $0x150] sm:$0xff]
    %v151 = vld [vmem:[#allocation2 + $0x158] sm:$0xff]
    %v152 = vld [vmem:[#allocation2 + $0x160] sm:$0xff]
    %v153 = vld [vmem:[#allocation2 + $0x168] sm:$0xff]
    %v154 = vld [vmem:[#allocation2 + $0x170] sm:$0xff]
    %v155 = vld [vmem:[#allocation2 + $0x178] sm:$0xff]
    %v156 = vld [vmem:[#allocation2 + $0x180] sm:$0xff]
    %v157 = vld [vmem:[#allocation2 + $0x188] sm:$0xff]
    %v158 = vld [vmem:[#allocation2 + $0x190] sm:$0xff]
    %v159 = vld [vmem:[#allocation2 + $0x198] sm:$0xff]
    %v160 = vld [vmem:[#allocation2 + $0x1a0] sm:$0xff]
    %v161 = vld [vmem:[#allocation2 + $0x1a8] sm:$0xff]
    %v162 = vld [vmem:[#allocation2 + $0x1b0] sm:$0xff]
    %v163 = vld [vmem:[#allocation2 + $0x1b8] sm:$0xff]
    %v164 = vld [vmem:[#allocation2 + $0x1c0] sm:$0xff]
    %v165 = vld [vmem:[#allocation2 + $0x1c8] sm:$0xff]
    %v166 = vld [vmem:[#allocation2 + $0x1d0] sm:$0xff]
    %v167 = vld [vmem:[#allocation2 + $0x1d8] sm:$0xff]
    %v168 = vld [vmem:[#allocation2 + $0x1e0] sm:$0xff]
    %v169 = vld [vmem:[#allocation2 + $0x1e8] sm:$0xff]
    %v170 = vld [vmem:[#allocation2 + $0x1f0] sm:$0xff]
    %v171 = vld [vmem:[#allocation2 + $0x1f8] sm:$0xff]
    %v172 = vld [vmem:[#allocation3] sm:$0xff]
    %v173 = vld [vmem:[#allocation3 + $0x8] sm:$0xff]
    %v174 = vld [vmem:[#allocation3 + $0x10] sm:$0xff]
    %v175 = vld [vmem:[#allocation3 + $0x18] sm:$0xff]
    %v176 = vld [vmem:[#allocation3 + $0x20] sm:$0xff]
    %v177 = vld [vmem:[#allocation3 + $0x28] sm:$0xff]
    %v178 = vld [vmem:[#allocation3 + $0x30] sm:$0xff]
    %v179 = vld [vmem:[#allocation3 + $0x38] sm:$0xff]
    %v180 = vld [vmem:[#allocation3 + $0x40] sm:$0xff]
    %v181 = vld [vmem:[#allocation3 + $0x48] sm:$0xff]
    %v182 = vld [vmem:[#allocation3 + $0x50] sm:$0xff]
    %v183 = vld [vmem:[#allocation3 + $0x58] sm:$0xff]
    %v184 = vld [vmem:[#allocation3 + $0x60] sm:$0xff]
    %v185 = vld [vmem:[#allocation3 + $0x68] sm:$0xff]
    %v186 = vld [vmem:[#allocation3 + $0x70] sm:$0xff]
    %v187 = vld [vmem:[#allocation3 + $0x78] sm:$0xff]
    %v188 = vld [vmem:[#allocation3 + $0x80] sm:$0xff]
    %v189 = vld [vmem:[#allocation3 + $0x88] sm:$0xff]
    %v190 = vld [vmem:[#allocation3 + $0x90] sm:$0xff]
    %v191 = vld [vmem:[#allocation3 + $0x98] sm:$0xff]
    %v192 = vld [vmem:[#allocation3 + $0xa0] sm:$0xff]
    %v193 = vld [vmem:[#allocation3 + $0xa8] sm:$0xff]
    %v194 = vld [vmem:[#allocation3 + $0xb0] sm:$0xff]
    %v195 = vld [vmem:[#allocation3 + $0xb8] sm:$0xff]
    %v196 = vld [vmem:[#allocation3 + $0xc0] sm:$0xff]
    %v197 = vld [vmem:[#allocation3 + $0xc8] sm:$0xff]
    %v198 = vld [vmem:[#allocation3 + $0xd0] sm:$0xff]
    %v199 = vld [vmem:[#allocation3 + $0xd8] sm:$0xff]
    %v200 = vld [vmem:[#allocation3 + $0xe0] sm:$0xff]
    %v201 = vld [vmem:[#allocation3 + $0xe8] sm:$0xff]
    %v202 = vld [vmem:[#allocation3 + $0xf0] sm:$0xff]
    %v203 = vld [vmem:[#allocation3 + $0xf8] sm:$0xff]
    %v204 = vld [vmem:[#allocation6] sm:$0xff]
    %v205 = vld [vmem:[#allocation6 + $0x8] sm:$0xff]
    %v206 = vld [vmem:[#allocation6 + $0x10] sm:$0xff]
    %v207 = vld [vmem:[#allocation6 + $0x18] sm:$0xff]
    %v208 = vld [vmem:[#allocation6 + $0x20] sm:$0xff]
    %v209 = vld [vmem:[#allocation6 + $0x28] sm:$0xff]
    %v210 = vld [vmem:[#allocation6 + $0x30] sm:$0xff]
    %v211 = vld [vmem:[#allocation6 + $0x38] sm:$0xff]
    %v212 = vld [vmem:[#allocation6 + $0x40] sm:$0xff]
    %v213 = vld [vmem:[#allocation6 + $0x48] sm:$0xff]
    %v214 = vld [vmem:[#allocation6 + $0x50] sm:$0xff]
    %v215 = vld [vmem:[#allocation6 + $0x58] sm:$0xff]
    %v216 = vld [vmem:[#allocation6 + $0x60] sm:$0xff]
    %v217 = vld [vmem:[#allocation6 + $0x68] sm:$0xff]
    %v218 = vld [vmem:[#allocation6 + $0x70] sm:$0xff]
    %v219 = vld [vmem:[#allocation6 + $0x78] sm:$0xff]
    %v220 = vld [vmem:[#allocation6 + $0x80] sm:$0xff]
    %v221 = vld [vmem:[#allocation6 + $0x88] sm:$0xff]
    %v222 = vld [vmem:[#allocation6 + $0x90] sm:$0xff]
    %v223 = vld [vmem:[#allocation6 + $0x98] sm:$0xff]
    %v224 = vld [vmem:[#allocation6 + $0xa0] sm:$0xff]
    %v225 = vld [vmem:[#allocation6 + $0xa8] sm:$0xff]
    %v226 = vld [vmem:[#allocation6 + $0xb0] sm:$0xff]
    %v227 = vld [vmem:[#allocation6 + $0xb8] sm:$0xff]
    %v228 = vld [vmem:[#allocation6 + $0xc0] sm:$0xff]
    %v229 = vld [vmem:[#allocation6 + $0xc8] sm:$0xff]
    %v230 = vld [vmem:[#allocation6 + $0xd0] sm:$0xff]
    %v231 = vld [vmem:[#allocation6 + $0xd8] sm:$0xff]
    %v232 = vld [vmem:[#allocation6 + $0xe0] sm:$0xff]
    %v233 = vld [vmem:[#allocation6 + $0xe8] sm:$0xff]
    %v234 = vld [vmem:[#allocation6 + $0xf0] sm:$0xff]
    %v235 = vld [vmem:[#allocation6 + $0xf8] sm:$0xff]
    %v268 = vunpack.c.l.b16 %v172
    %v269 = vunpack.c.h.b16 %v172
    %v270 = vunpack.c.l.b16 %v173
    %v271 = vunpack.c.h.b16 %v173
    %v272 = vunpack.c.l.b16 %v174
    %v273 = vunpack.c.h.b16 %v174
    %v274 = vunpack.c.l.b16 %v175
    %v275 = vunpack.c.h.b16 %v175
    %v276 = vunpack.c.l.b16 %v176
    %v277 = vunpack.c.h.b16 %v176
    %v278 = vunpack.c.l.b16 %v177
    %v279 = vunpack.c.h.b16 %v177
    %v280 = vunpack.c.l.b16 %v178
    %v281 = vunpack.c.h.b16 %v178
    %v282 = vunpack.c.l.b16 %v179
    %v283 = vunpack.c.h.b16 %v179
    %v284 = vunpack.c.l.b16 %v180
    %v285 = vunpack.c.h.b16 %v180
    %v286 = vunpack.c.l.b16 %v181
    %v287 = vunpack.c.h.b16 %v181
    %v288 = vunpack.c.l.b16 %v182
    %v289 = vunpack.c.h.b16 %v182
    %v290 = vunpack.c.l.b16 %v183
    %v291 = vunpack.c.h.b16 %v183
    %v292 = vunpack.c.l.b16 %v184
    %v293 = vunpack.c.h.b16 %v184
    %v294 = vunpack.c.l.b16 %v185
    %v295 = vunpack.c.h.b16 %v185
    %v296 = vunpack.c.l.b16 %v186
    %v297 = vunpack.c.h.b16 %v186
    %v298 = vunpack.c.l.b16 %v187
    %v299 = vunpack.c.h.b16 %v187
    %v300 = vunpack.c.l.b16 %v188
    %v301 = vunpack.c.h.b16 %v188
    %v302 = vunpack.c.l.b16 %v189
    %v303 = vunpack.c.h.b16 %v189
    %v304 = vunpack.c.l.b16 %v190
    %v305 = vunpack.c.h.b16 %v190
    %v306 = vunpack.c.l.b16 %v191
    %v307 = vunpack.c.h.b16 %v191
    %v308 = vunpack.c.l.b16 %v192
    %v309 = vunpack.c.h.b16 %v192
    %v310 = vunpack.c.l.b16 %v193
    %v311 = vunpack.c.h.b16 %v193
    %v312 = vunpack.c.l.b16 %v194
    %v313 = vunpack.c.h.b16 %v194
    %v314 = vunpack.c.l.b16 %v195
    %v315 = vunpack.c.h.b16 %v195
    %v316 = vunpack.c.l.b16 %v196
    %v317 = vunpack.c.h.b16 %v196
    %v318 = vunpack.c.l.b16 %v197
    %v319 = vunpack.c.h.b16 %v197
    %v320 = vunpack.c.l.b16 %v198
    %v321 = vunpack.c.h.b16 %v198
    %v322 = vunpack.c.l.b16 %v199
    %v323 = vunpack.c.h.b16 %v199
    %v324 = vunpack.c.l.b16 %v200
    %v325 = vunpack.c.h.b16 %v200
    %v326 = vunpack.c.l.b16 %v201
    %v327 = vunpack.c.h.b16 %v201
    %v328 = vunpack.c.l.b16 %v202
    %v329 = vunpack.c.h.b16 %v202
    %v330 = vunpack.c.l.b16 %v203
    %v331 = vunpack.c.h.b16 %v203
    %v332 = vpack.c.b16 %v270, %v268
    %v333 = vpack.c.b16 %v271, %v269
    %v334 = vpack.c.b16 %v274, %v272
    %v335 = vpack.c.b16 %v275, %v273
    %v336 = vpack.c.b16 %v278, %v276
    %v337 = vpack.c.b16 %v279, %v277
    %v338 = vpack.c.b16 %v282, %v280
    %v339 = vpack.c.b16 %v283, %v281
    %v340 = vpack.c.b16 %v286, %v284
    %v341 = vpack.c.b16 %v287, %v285
    %v342 = vpack.c.b16 %v290, %v288
    %v343 = vpack.c.b16 %v291, %v289
    %v344 = vpack.c.b16 %v294, %v292
    %v345 = vpack.c.b16 %v295, %v293
    %v346 = vpack.c.b16 %v298, %v296
    %v347 = vpack.c.b16 %v299, %v297
    %v348 = vpack.c.b16 %v302, %v300
    %v349 = vpack.c.b16 %v303, %v301
    %v350 = vpack.c.b16 %v306, %v304
    %v351 = vpack.c.b16 %v307, %v305
    %v352 = vpack.c.b16 %v310, %v308
    %v353 = vpack.c.b16 %v311, %v309
    %v354 = vpack.c.b16 %v314, %v312
    %v355 = vpack.c.b16 %v315, %v313
    %v356 = vpack.c.b16 %v318, %v316
    %v357 = vpack.c.b16 %v319, %v317
    %v358 = vpack.c.b16 %v322, %v320
    %v359 = vpack.c.b16 %v323, %v321
    %v360 = vpack.c.b16 %v326, %v324
    %v361 = vpack.c.b16 %v327, %v325
    %v362 = vpack.c.b16 %v330, %v328
    %v363 = vpack.c.b16 %v331, %v329
    %v428 = vunpack.c.l.b16 %v204
    %v429 = vunpack.c.h.b16 %v204
    %v430 = vunpack.c.l.b16 %v205
    %v431 = vunpack.c.h.b16 %v205
    %v432 = vunpack.c.l.b16 %v206
    %v433 = vunpack.c.h.b16 %v206
    %v434 = vunpack.c.l.b16 %v207
    %v435 = vunpack.c.h.b16 %v207
    %v436 = vunpack.c.l.b16 %v208
    %v437 = vunpack.c.h.b16 %v208
    %v438 = vunpack.c.l.b16 %v209
    %v439 = vunpack.c.h.b16 %v209
    %v440 = vunpack.c.l.b16 %v210
    %v441 = vunpack.c.h.b16 %v210
    %v442 = vunpack.c.l.b16 %v211
    %v443 = vunpack.c.h.b16 %v211
    %v444 = vunpack.c.l.b16 %v212
    %v445 = vunpack.c.h.b16 %v212
    %v446 = vunpack.c.l.b16 %v213
    %v447 = vunpack.c.h.b16 %v213
    %v448 = vunpack.c.l.b16 %v214
    %v449 = vunpack.c.h.b16 %v214
    %v450 = vunpack.c.l.b16 %v215
    %v451 = vunpack.c.h.b16 %v215
    %v452 = vunpack.c.l.b16 %v216
    %v453 = vunpack.c.h.b16 %v216
    %v454 = vunpack.c.l.b16 %v217
    %v455 = vunpack.c.h.b16 %v217
    %v456 = vunpack.c.l.b16 %v218
    %v457 = vunpack.c.h.b16 %v218
    %v458 = vunpack.c.l.b16 %v219
    %v459 = vunpack.c.h.b16 %v219
    %v460 = vunpack.c.l.b16 %v220
    %v461 = vunpack.c.h.b16 %v220
    %v462 = vunpack.c.l.b16 %v221
    %v463 = vunpack.c.h.b16 %v221
    %v464 = vunpack.c.l.b16 %v222
    %v465 = vunpack.c.h.b16 %v222
    %v466 = vunpack.c.l.b16 %v223
    %v467 = vunpack.c.h.b16 %v223
    %v468 = vunpack.c.l.b16 %v224
    %v469 = vunpack.c.h.b16 %v224
    %v470 = vunpack.c.l.b16 %v225
    %v471 = vunpack.c.h.b16 %v225
    %v472 = vunpack.c.l.b16 %v226
    %v473 = vunpack.c.h.b16 %v226
    %v474 = vunpack.c.l.b16 %v227
    %v475 = vunpack.c.h.b16 %v227
    %v476 = vunpack.c.l.b16 %v228
    %v477 = vunpack.c.h.b16 %v228
    %v478 = vunpack.c.l.b16 %v229
    %v479 = vunpack.c.h.b16 %v229
    %v480 = vunpack.c.l.b16 %v230
    %v481 = vunpack.c.h.b16 %v230
    %v482 = vunpack.c.l.b16 %v231
    %v483 = vunpack.c.h.b16 %v231
    %v484 = vunpack.c.l.b16 %v232
    %v485 = vunpack.c.h.b16 %v232
    %v486 = vunpack.c.l.b16 %v233
    %v487 = vunpack.c.h.b16 %v233
    %v488 = vunpack.c.l.b16 %v234
    %v489 = vunpack.c.h.b16 %v234
    %v490 = vunpack.c.l.b16 %v235
    %v491 = vunpack.c.h.b16 %v235
    %v492 = vpack.c.b16 %v430, %v428
    %v493 = vpack.c.b16 %v431, %v429
    %v494 = vpack.c.b16 %v434, %v432
    %v495 = vpack.c.b16 %v435, %v433
    %v496 = vpack.c.b16 %v438, %v436
    %v497 = vpack.c.b16 %v439, %v437
    %v498 = vpack.c.b16 %v442, %v440
    %v499 = vpack.c.b16 %v443, %v441
    %v500 = vpack.c.b16 %v446, %v444
    %v501 = vpack.c.b16 %v447, %v445
    %v502 = vpack.c.b16 %v450, %v448
    %v503 = vpack.c.b16 %v451, %v449
    %v504 = vpack.c.b16 %v454, %v452
    %v505 = vpack.c.b16 %v455, %v453
    %v506 = vpack.c.b16 %v458, %v456
    %v507 = vpack.c.b16 %v459, %v457
    %v508 = vpack.c.b16 %v462, %v460
    %v509 = vpack.c.b16 %v463, %v461
    %v510 = vpack.c.b16 %v466, %v464
    %v511 = vpack.c.b16 %v467, %v465
    %v512 = vpack.c.b16 %v470, %v468
    %v513 = vpack.c.b16 %v471, %v469
    %v514 = vpack.c.b16 %v474, %v472
    %v515 = vpack.c.b16 %v475, %v473
    %v516 = vpack.c.b16 %v478, %v476
    %v517 = vpack.c.b16 %v479, %v477
    %v518 = vpack.c.b16 %v482, %v480
    %v519 = vpack.c.b16 %v483, %v481
    %v520 = vpack.c.b16 %v486, %v484
    %v521 = vpack.c.b16 %v487, %v485
    %v522 = vpack.c.b16 %v490, %v488
    %v523 = vpack.c.b16 %v491, %v489
    %556 = vmatprep.subr.bf16.mxu0 %v493
    %557 = vmatpush1.bf16.msra.mxu0 %v492
    %558 = vmatprep.subr.bf16.mxu0 %v495
    %559 = vmatpush1.bf16.msra.mxu0 %v494
    %560 = vmatprep.subr.bf16.mxu0 %v497
    %561 = vmatpush1.bf16.msra.mxu0 %v496
    %562 = vmatprep.subr.bf16.mxu0 %v499
    %563 = vmatpush1.bf16.msra.mxu0 %v498
    %564 = vmatprep.subr.bf16.mxu0 %v501
    %565 = vmatpush1.bf16.msra.mxu0 %v500
    %566 = vmatprep.subr.bf16.mxu0 %v503
    %567 = vmatpush1.bf16.msra.mxu0 %v502
    %568 = vmatprep.subr.bf16.mxu0 %v505
    %569 = vmatpush1.bf16.msra.mxu0 %v504
    %570 = vmatprep.subr.bf16.mxu0 %v507
    %571 = vmatpush1.bf16.msra.mxu0 %v506
    %572 = vmatprep.subr.bf16.mxu0 %v509
    %573 = vmatpush1.bf16.msra.mxu0 %v508
    %574 = vmatprep.subr.bf16.mxu0 %v511
    %575 = vmatpush1.bf16.msra.mxu0 %v510
    %576 = vmatprep.subr.bf16.mxu0 %v513
    %577 = vmatpush1.bf16.msra.mxu0 %v512
    %578 = vmatprep.subr.bf16.mxu0 %v515
    %579 = vmatpush1.bf16.msra.mxu0 %v514
    %580 = vmatprep.subr.bf16.mxu0 %v517
    %581 = vmatpush1.bf16.msra.mxu0 %v516
    %582 = vmatprep.subr.bf16.mxu0 %v519
    %583 = vmatpush1.bf16.msra.mxu0 %v518
    %584 = vmatprep.subr.bf16.mxu0 %v521
    %585 = vmatpush1.bf16.msra.mxu0 %v520
    %586 = vmatprep.subr.bf16.mxu0 %v523
    %587 = vmatpush1.bf16.msra.mxu0 %v522
    %588 = vmatprep.mubr.bf16.mxu0 %v333
    %589 = vmatmul.mubr.bf16.gmra.mrb[0].mxu0 %v332
    %v590 = vpop.f32.mrb[0].mxu0
    %v591 = vadd.f32 0.0, %v590
    %v592 = vpop.f32.mrb[0].mxu0
    %v593 = vadd.f32 0.0, %v592
    %v594 = vpop.f32.mrb[0].mxu0
    %v595 = vadd.f32 0.0, %v594
    %v596 = vpop.f32.mrb[0].mxu0
    %v597 = vadd.f32 0.0, %v596
    %598 = vmatprep.mubr.bf16.mxu0 %v335
    %599 = vmatmul.mubr.bf16.gmra.mrb[0].mxu0 %v334
    %v600 = vpop.f32.mrb[0].mxu0
    %v601 = vadd.f32 0.0, %v600
    %v602 = vpop.f32.mrb[0].mxu0
    %v603 = vadd.f32 0.0, %v602
    %v604 = vpop.f32.mrb[0].mxu0
    %v605 = vadd.f32 0.0, %v604
    %v606 = vpop.f32.mrb[0].mxu0
    %v607 = vadd.f32 0.0, %v606
    %608 = vmatprep.mubr.bf16.mxu0 %v337
    %609 = vmatmul.mubr.bf16.gmra.mrb[0].mxu0 %v336
    %v610 = vpop.f32.mrb[0].mxu0
    %v611 = vadd.f32 0.0, %v610
    %v612 = vpop.f32.mrb[0].mxu0
    %v613 = vadd.f32 0.0, %v612
    %v614 = vpop.f32.mrb[0].mxu0
    %v615 = vadd.f32 0.0, %v614
    %v616 = vpop.f32.mrb[0].mxu0
    %v617 = vadd.f32 0.0, %v616
    %618 = vmatprep.mubr.bf16.mxu0 %v339
    %619 = vmatmul.mubr.bf16.gmra.mrb[0].mxu0 %v338
    %v620 = vpop.f32.mrb[0].mxu0
    %v621 = vadd.f32 0.0, %v620
    %v622 = vpop.f32.mrb[0].mxu0
    %v623 = vadd.f32 0.0, %v622
    %v624 = vpop.f32.mrb[0].mxu0
    %v625 = vadd.f32 0.0, %v624
    %v626 = vpop.f32.mrb[0].mxu0
    %v627 = vadd.f32 0.0, %v626
    %628 = vmatprep.mubr.bf16.mxu0 %v341
    %629 = vmatmul.mubr.bf16.gmra.mrb[0].mxu0 %v340
    %v630 = vpop.f32.mrb[0].mxu0
    %v631 = vadd.f32 0.0, %v630
    %v632 = vpop.f32.mrb[0].mxu0
    %v633 = vadd.f32 0.0, %v632
    %v634 = vpop.f32.mrb[0].mxu0
    %v635 = vadd.f32 0.0, %v634
    %v636 = vpop.f32.mrb[0].mxu0
    %v637 = vadd.f32 0.0, %v636
    %638 = vmatprep.mubr.bf16.mxu0 %v343
    %639 = vmatmul.mubr.bf16.gmra.mrb[0].mxu0 %v342
    %v640 = vpop.f32.mrb[0].mxu0
    %v641 = vadd.f32 0.0, %v640
    %v642 = vpop.f32.mrb[0].mxu0
    %v643 = vadd.f32 0.0, %v642
    %v644 = vpop.f32.mrb[0].mxu0
    %v645 = vadd.f32 0.0, %v644
    %v646 = vpop.f32.mrb[0].mxu0
    %v647 = vadd.f32 0.0, %v646
    %648 = vmatprep.mubr.bf16.mxu0 %v345
    %649 = vmatmul.mubr.bf16.gmra.mrb[0].mxu0 %v344
    %v650 = vpop.f32.mrb[0].mxu0
    %v651 = vadd.f32 0.0, %v650
    %v652 = vpop.f32.mrb[0].mxu0
    %v653 = vadd.f32 0.0, %v652
    %v654 = vpop.f32.mrb[0].mxu0
    %v655 = vadd.f32 0.0, %v654
    %v656 = vpop.f32.mrb[0].mxu0
    %v657 = vadd.f32 0.0, %v656
    %658 = vmatprep.mubr.bf16.mxu0 %v347
    %659 = vmatmul.mubr.bf16.gmra.mrb[0].mxu0 %v346
    %v660 = vpop.f32.mrb[0].mxu0
    %v661 = vadd.f32 0.0, %v660
    %v662 = vpop.f32.mrb[0].mxu0
    %v663 = vadd.f32 0.0, %v662
    %v664 = vpop.f32.mrb[0].mxu0
    %v665 = vadd.f32 0.0, %v664
    %v666 = vpop.f32.mrb[0].mxu0
    %v667 = vadd.f32 0.0, %v666
    %668 = vmatprep.mubr.bf16.mxu0 %v349
    %669 = vmatmul.mubr.bf16.gmra.mrb[0].mxu0 %v348
    %v670 = vpop.f32.mrb[0].mxu0
    %v671 = vadd.f32 0.0, %v670
    %v672 = vpop.f32.mrb[0].mxu0
    %v673 = vadd.f32 0.0, %v672
    %v674 = vpop.f32.mrb[0].mxu0
    %v675 = vadd.f32 0.0, %v674
    %v676 = vpop.f32.mrb[0].mxu0
    %v677 = vadd.f32 0.0, %v676
    %678 = vmatprep.mubr.bf16.mxu0 %v351
    %679 = vmatmul.mubr.bf16.gmra.mrb[0].mxu0 %v350
    %v680 = vpop.f32.mrb[0].mxu0
    %v681 = vadd.f32 0.0, %v680
    %v682 = vpop.f32.mrb[0].mxu0
    %v683 = vadd.f32 0.0, %v682
    %v684 = vpop.f32.mrb[0].mxu0
    %v685 = vadd.f32 0.0, %v684
    %v686 = vpop.f32.mrb[0].mxu0
    %v687 = vadd.f32 0.0, %v686
    %688 = vmatprep.mubr.bf16.mxu0 %v353
    %689 = vmatmul.mubr.bf16.gmra.mrb[0].mxu0 %v352
    %v690 = vpop.f32.mrb[0].mxu0
    %v691 = vadd.f32 0.0, %v690
    %v692 = vpop.f32.mrb[0].mxu0
    %v693 = vadd.f32 0.0, %v692
    %v694 = vpop.f32.mrb[0].mxu0
    %v695 = vadd.f32 0.0, %v694
    %v696 = vpop.f32.mrb[0].mxu0
    %v697 = vadd.f32 0.0, %v696
    %698 = vmatprep.mubr.bf16.mxu0 %v355
    %699 = vmatmul.mubr.bf16.gmra.mrb[0].mxu0 %v354
    %v700 = vpop.f32.mrb[0].mxu0
    %v701 = vadd.f32 0.0, %v700
    %v702 = vpop.f32.mrb[0].mxu0
    %v703 = vadd.f32 0.0, %v702
    %v704 = vpop.f32.mrb[0].mxu0
    %v705 = vadd.f32 0.0, %v704
    %v706 = vpop.f32.mrb[0].mxu0
    %v707 = vadd.f32 0.0, %v706
    %708 = vmatprep.mubr.bf16.mxu0 %v357
    %709 = vmatmul.mubr.bf16.gmra.mrb[0].mxu0 %v356
    %v710 = vpop.f32.mrb[0].mxu0
    %v711 = vadd.f32 0.0, %v710
    %v712 = vpop.f32.mrb[0].mxu0
    %v713 = vadd.f32 0.0, %v712
    %v714 = vpop.f32.mrb[0].mxu0
    %v715 = vadd.f32 0.0, %v714
    %v716 = vpop.f32.mrb[0].mxu0
    %v717 = vadd.f32 0.0, %v716
    %718 = vmatprep.mubr.bf16.mxu0 %v359
    %719 = vmatmul.mubr.bf16.gmra.mrb[0].mxu0 %v358
    %v720 = vpop.f32.mrb[0].mxu0
    %v721 = vadd.f32 0.0, %v720
    %v722 = vpop.f32.mrb[0].mxu0
    %v723 = vadd.f32 0.0, %v722
    %v724 = vpop.f32.mrb[0].mxu0
    %v725 = vadd.f32 0.0, %v724
    %v726 = vpop.f32.mrb[0].mxu0
    %v727 = vadd.f32 0.0, %v726
    %728 = vmatprep.mubr.bf16.mxu0 %v361
    %729 = vmatmul.mubr.bf16.gmra.mrb[0].mxu0 %v360
    %v730 = vpop.f32.mrb[0].mxu0
    %v731 = vadd.f32 0.0, %v730
    %v732 = vpop.f32.mrb[0].mxu0
    %v733 = vadd.f32 0.0, %v732
    %v734 = vpop.f32.mrb[0].mxu0
    %v735 = vadd.f32 0.0, %v734
    %v736 = vpop.f32.mrb[0].mxu0
    %v737 = vadd.f32 0.0, %v736
    %738 = vmatprep.mubr.bf16.mxu0 %v363
    %739 = vmatmul.mubr.bf16.gmra.mrb[0].mxu0 %v362
    %v740 = vpop.f32.mrb[0].mxu0
    %v741 = vadd.f32 0.0, %v740
    %v742 = vpop.f32.mrb[0].mxu0
    %v743 = vadd.f32 0.0, %v742
    %v744 = vpop.f32.mrb[0].mxu0
    %v745 = vadd.f32 0.0, %v744
    %v746 = vpop.f32.mrb[0].mxu0
    %v747 = vadd.f32 0.0, %v746
    %748 = vdwg.mxu0
    %v749 = vadd.f32 %v108, %v591
    %v750 = vadd.f32 %v109, %v593
    %v751 = vadd.f32 %v110, %v595
    %v752 = vadd.f32 %v111, %v597
    %v753 = vadd.f32 %v112, %v601
    %v754 = vadd.f32 %v113, %v603
    %v755 = vadd.f32 %v114, %v605
    %v756 = vadd.f32 %v115, %v607
    %v757 = vadd.f32 %v116, %v611
    %v758 = vadd.f32 %v117, %v613
    %v759 = vadd.f32 %v118, %v615
    %v760 = vadd.f32 %v119, %v617
    %v761 = vadd.f32 %v120, %v621
    %v762 = vadd.f32 %v121, %v623
    %v763 = vadd.f32 %v122, %v625
    %v764 = vadd.f32 %v123, %v627
    %v765 = vadd.f32 %v124, %v631
    %v766 = vadd.f32 %v125, %v633
    %v767 = vadd.f32 %v126, %v635
    %v768 = vadd.f32 %v127, %v637
    %v769 = vadd.f32 %v128, %v641
    %v770 = vadd.f32 %v129, %v643
    %v771 = vadd.f32 %v130, %v645
    %v772 = vadd.f32 %v131, %v647
    %v773 = vadd.f32 %v132, %v651
    %v774 = vadd.f32 %v133, %v653
    %v775 = vadd.f32 %v134, %v655
    %v776 = vadd.f32 %v135, %v657
    %v777 = vadd.f32 %v136, %v661
    %v778 = vadd.f32 %v137, %v663
    %v779 = vadd.f32 %v138, %v665
    %v780 = vadd.f32 %v139, %v667
    %v781 = vadd.f32 %v140, %v671
    %v782 = vadd.f32 %v141, %v673
    %v783 = vadd.f32 %v142, %v675
    %v784 = vadd.f32 %v143, %v677
    %v785 = vadd.f32 %v144, %v681
    %v786 = vadd.f32 %v145, %v683
    %v787 = vadd.f32 %v146, %v685
    %v788 = vadd.f32 %v147, %v687
    %v789 = vadd.f32 %v148, %v691
    %v790 = vadd.f32 %v149, %v693
    %v791 = vadd.f32 %v150, %v695
    %v792 = vadd.f32 %v151, %v697
    %v793 = vadd.f32 %v152, %v701
    %v794 = vadd.f32 %v153, %v703
    %v795 = vadd.f32 %v154, %v705
    %v796 = vadd.f32 %v155, %v707
    %v797 = vadd.f32 %v156, %v711
    %v798 = vadd.f32 %v157, %v713
    %v799 = vadd.f32 %v158, %v715
    %v800 = vadd.f32 %v159, %v717
    %v801 = vadd.f32 %v160, %v721
    %v802 = vadd.f32 %v161, %v723
    %v803 = vadd.f32 %v162, %v725
    %v804 = vadd.f32 %v163, %v727
    %v805 = vadd.f32 %v164, %v731
    %v806 = vadd.f32 %v165, %v733
    %v807 = vadd.f32 %v166, %v735
    %v808 = vadd.f32 %v167, %v737
    %v809 = vadd.f32 %v168, %v741
    %v810 = vadd.f32 %v169, %v743
    %v811 = vadd.f32 %v170, %v745
    %v812 = vadd.f32 %v171, %v747
    %813 = vst [vmem:[#allocation2] sm:$0xff] %v749
    %814 = vst [vmem:[#allocation2 + $0x8] sm:$0xff] %v750
    %815 = vst [vmem:[#allocation2 + $0x10] sm:$0xff] %v751
    %816 = vst [vmem:[#allocation2 + $0x18] sm:$0xff] %v752
    %817 = vst [vmem:[#allocation2 + $0x20] sm:$0xff] %v753
    %818 = vst [vmem:[#allocation2 + $0x28] sm:$0xff] %v754
    %819 = vst [vmem:[#allocation2 + $0x30] sm:$0xff] %v755
    %820 = vst [vmem:[#allocation2 + $0x38] sm:$0xff] %v756
    %821 = vst [vmem:[#allocation2 + $0x40] sm:$0xff] %v757
    %822 = vst [vmem:[#allocation2 + $0x48] sm:$0xff] %v758
    %823 = vst [vmem:[#allocation2 + $0x50] sm:$0xff] %v759
    %824 = vst [vmem:[#allocation2 + $0x58] sm:$0xff] %v760
    %825 = vst [vmem:[#allocation2 + $0x60] sm:$0xff] %v761
    %826 = vst [vmem:[#allocation2 + $0x68] sm:$0xff] %v762
    %827 = vst [vmem:[#allocation2 + $0x70] sm:$0xff] %v763
    %828 = vst [vmem:[#allocation2 + $0x78] sm:$0xff] %v764
    %829 = vst [vmem:[#allocation2 + $0x80] sm:$0xff] %v765
    %830 = vst [vmem:[#allocation2 + $0x88] sm:$0xff] %v766
    %831 = vst [vmem:[#allocation2 + $0x90] sm:$0xff] %v767
    %832 = vst [vmem:[#allocation2 + $0x98] sm:$0xff] %v768
    %833 = vst [vmem:[#allocation2 + $0xa0] sm:$0xff] %v769
    %834 = vst [vmem:[#allocation2 + $0xa8] sm:$0xff] %v770
    %835 = vst [vmem:[#allocation2 + $0xb0] sm:$0xff] %v771
    %836 = vst [vmem:[#allocation2 + $0xb8] sm:$0xff] %v772
    %837 = vst [vmem:[#allocation2 + $0xc0] sm:$0xff] %v773
    %838 = vst [vmem:[#allocation2 + $0xc8] sm:$0xff] %v774
    %839 = vst [vmem:[#allocation2 + $0xd0] sm:$0xff] %v775
    %840 = vst [vmem:[#allocation2 + $0xd8] sm:$0xff] %v776
    %841 = vst [vmem:[#allocation2 + $0xe0] sm:$0xff] %v777
    %842 = vst [vmem:[#allocation2 + $0xe8] sm:$0xff] %v778
    %843 = vst [vmem:[#allocation2 + $0xf0] sm:$0xff] %v779
    %844 = vst [vmem:[#allocation2 + $0xf8] sm:$0xff] %v780
    %845 = vst [vmem:[#allocation2 + $0x100] sm:$0xff] %v781
    %846 = vst [vmem:[#allocation2 + $0x108] sm:$0xff] %v782
    %847 = vst [vmem:[#allocation2 + $0x110] sm:$0xff] %v783
    %848 = vst [vmem:[#allocation2 + $0x118] sm:$0xff] %v784
    %849 = vst [vmem:[#allocation2 + $0x120] sm:$0xff] %v785
    %850 = vst [vmem:[#allocation2 + $0x128] sm:$0xff] %v786
    %851 = vst [vmem:[#allocation2 + $0x130] sm:$0xff] %v787
    %852 = vst [vmem:[#allocation2 + $0x138] sm:$0xff] %v788
    %853 = vst [vmem:[#allocation2 + $0x140] sm:$0xff] %v789
    %854 = vst [vmem:[#allocation2 + $0x148] sm:$0xff] %v790
    %855 = vst [vmem:[#allocation2 + $0x150] sm:$0xff] %v791
    %856 = vst [vmem:[#allocation2 + $0x158] sm:$0xff] %v792
    %857 = vst [vmem:[#allocation2 + $0x160] sm:$0xff] %v793
    %858 = vst [vmem:[#allocation2 + $0x168] sm:$0xff] %v794
    %859 = vst [vmem:[#allocation2 + $0x170] sm:$0xff] %v795
    %860 = vst [vmem:[#allocation2 + $0x178] sm:$0xff] %v796
    %861 = vst [vmem:[#allocation2 + $0x180] sm:$0xff] %v797
    %862 = vst [vmem:[#allocation2 + $0x188] sm:$0xff] %v798
    %863 = vst [vmem:[#allocation2 + $0x190] sm:$0xff] %v799
    %864 = vst [vmem:[#allocation2 + $0x198] sm:$0xff] %v800
    %865 = vst [vmem:[#allocation2 + $0x1a0] sm:$0xff] %v801
    %866 = vst [vmem:[#allocation2 + $0x1a8] sm:$0xff] %v802
    %867 = vst [vmem:[#allocation2 + $0x1b0] sm:$0xff] %v803
    %868 = vst [vmem:[#allocation2 + $0x1b8] sm:$0xff] %v804
    %869 = vst [vmem:[#allocation2 + $0x1c0] sm:$0xff] %v805
    %870 = vst [vmem:[#allocation2 + $0x1c8] sm:$0xff] %v806
    %871 = vst [vmem:[#allocation2 + $0x1d0] sm:$0xff] %v807
    %872 = vst [vmem:[#allocation2 + $0x1d8] sm:$0xff] %v808
    %873 = vst [vmem:[#allocation2 + $0x1e0] sm:$0xff] %v809
    %874 = vst [vmem:[#allocation2 + $0x1e8] sm:$0xff] %v810
    %875 = vst [vmem:[#allocation2 + $0x1f0] sm:$0xff] %v811
    %876 = vst [vmem:[#allocation2 + $0x1f8] sm:$0xff] %v812
    // Predicated region
    $region22: #{tpu_custom_call.1} parent=1 // pred_check
      %p877 = pneg %p40
    $region23: #{tpu_custom_call.1} parent=1 // pred_check_branch
      %879 = sbr.rel (%p877) target = $region25
    $region24: #{tpu_custom_call.1} parent=1 // pred_region
      %v880 = vld [vmem:[#allocation2] sm:$0xff]
      %v881 = vld [vmem:[#allocation2 + $0x8] sm:$0xff]
      %v882 = vld [vmem:[#allocation2 + $0x10] sm:$0xff]
      %v883 = vld [vmem:[#allocation2 + $0x18] sm:$0xff]
      %v884 = vld [vmem:[#allocation2 + $0x20] sm:$0xff]
      %v885 = vld [vmem:[#allocation2 + $0x28] sm:$0xff]
      %v886 = vld [vmem:[#allocation2 + $0x30] sm:$0xff]
      %v887 = vld [vmem:[#allocation2 + $0x38] sm:$0xff]
      %v888 = vld [vmem:[#allocation2 + $0x40] sm:$0xff]
      %v889 = vld [vmem:[#allocation2 + $0x48] sm:$0xff]
      %v890 = vld [vmem:[#allocation2 + $0x50] sm:$0xff]
      %v891 = vld [vmem:[#allocation2 + $0x58] sm:$0xff]
      %v892 = vld [vmem:[#allocation2 + $0x60] sm:$0xff]
      %v893 = vld [vmem:[#allocation2 + $0x68] sm:$0xff]
      %v894 = vld [vmem:[#allocation2 + $0x70] sm:$0xff]
      %v895 = vld [vmem:[#allocation2 + $0x78] sm:$0xff]
      %v896 = vld [vmem:[#allocation2 + $0x80] sm:$0xff]
      %v897 = vld [vmem:[#allocation2 + $0x88] sm:$0xff]
      %v898 = vld [vmem:[#allocation2 + $0x90] sm:$0xff]
      %v899 = vld [vmem:[#allocation2 + $0x98] sm:$0xff]
      %v900 = vld [vmem:[#allocation2 + $0xa0] sm:$0xff]
      %v901 = vld [vmem:[#allocation2 + $0xa8] sm:$0xff]
      %v902 = vld [vmem:[#allocation2 + $0xb0] sm:$0xff]
      %v903 = vld [vmem:[#allocation2 + $0xb8] sm:$0xff]
      %v904 = vld [vmem:[#allocation2 + $0xc0] sm:$0xff]
      %v905 = vld [vmem:[#allocation2 + $0xc8] sm:$0xff]
      %v906 = vld [vmem:[#allocation2 + $0xd0] sm:$0xff]
      %v907 = vld [vmem:[#allocation2 + $0xd8] sm:$0xff]
      %v908 = vld [vmem:[#allocation2 + $0xe0] sm:$0xff]
      %v909 = vld [vmem:[#allocation2 + $0xe8] sm:$0xff]
      %v910 = vld [vmem:[#allocation2 + $0xf0] sm:$0xff]
      %v911 = vld [vmem:[#allocation2 + $0xf8] sm:$0xff]
      %v912 = vld [vmem:[#allocation2 + $0x100] sm:$0xff]
      %v913 = vld [vmem:[#allocation2 + $0x108] sm:$0xff]
      %v914 = vld [vmem:[#allocation2 + $0x110] sm:$0xff]
      %v915 = vld [vmem:[#allocation2 + $0x118] sm:$0xff]
      %v916 = vld [vmem:[#allocation2 + $0x120] sm:$0xff]
      %v917 = vld [vmem:[#allocation2 + $0x128] sm:$0xff]
      %v918 = vld [vmem:[#allocation2 + $0x130] sm:$0xff]
      %v919 = vld [vmem:[#allocation2 + $0x138] sm:$0xff]
      %v920 = vld [vmem:[#allocation2 + $0x140] sm:$0xff]
      %v921 = vld [vmem:[#allocation2 + $0x148] sm:$0xff]
      %v922 = vld [vmem:[#allocation2 + $0x150] sm:$0xff]
      %v923 = vld [vmem:[#allocation2 + $0x158] sm:$0xff]
      %v924 = vld [vmem:[#allocation2 + $0x160] sm:$0xff]
      %v925 = vld [vmem:[#allocation2 + $0x168] sm:$0xff]
      %v926 = vld [vmem:[#allocation2 + $0x170] sm:$0xff]
      %v927 = vld [vmem:[#allocation2 + $0x178] sm:$0xff]
      %v928 = vld [vmem:[#allocation2 + $0x180] sm:$0xff]
      %v929 = vld [vmem:[#allocation2 + $0x188] sm:$0xff]
      %v930 = vld [vmem:[#allocation2 + $0x190] sm:$0xff]
      %v931 = vld [vmem:[#allocation2 + $0x198] sm:$0xff]
      %v932 = vld [vmem:[#allocation2 + $0x1a0] sm:$0xff]
      %v933 = vld [vmem:[#allocation2 + $0x1a8] sm:$0xff]
      %v934 = vld [vmem:[#allocation2 + $0x1b0] sm:$0xff]
      %v935 = vld [vmem:[#allocation2 + $0x1b8] sm:$0xff]
      %v936 = vld [vmem:[#allocation2 + $0x1c0] sm:$0xff]
      %v937 = vld [vmem:[#allocation2 + $0x1c8] sm:$0xff]
      %v938 = vld [vmem:[#allocation2 + $0x1d0] sm:$0xff]
      %v939 = vld [vmem:[#allocation2 + $0x1d8] sm:$0xff]
      %v940 = vld [vmem:[#allocation2 + $0x1e0] sm:$0xff]
      %v941 = vld [vmem:[#allocation2 + $0x1e8] sm:$0xff]
      %v942 = vld [vmem:[#allocation2 + $0x1f0] sm:$0xff]
      %v943 = vld [vmem:[#allocation2 + $0x1f8] sm:$0xff]
      %v944 = vpack.c.bf16 %v882, %v880
      %v945 = vpack.c.bf16 %v883, %v881
      %v946 = vpack.c.bf16 %v886, %v884
      %v947 = vpack.c.bf16 %v887, %v885
      %v948 = vpack.c.bf16 %v890, %v888
      %v949 = vpack.c.bf16 %v891, %v889
      %v950 = vpack.c.bf16 %v894, %v892
      %v951 = vpack.c.bf16 %v895, %v893
      %v952 = vpack.c.bf16 %v898, %v896
      %v953 = vpack.c.bf16 %v899, %v897
      %v954 = vpack.c.bf16 %v902, %v900
      %v955 = vpack.c.bf16 %v903, %v901
      %v956 = vpack.c.bf16 %v906, %v904
      %v957 = vpack.c.bf16 %v907, %v905
      %v958 = vpack.c.bf16 %v910, %v908
      %v959 = vpack.c.bf16 %v911, %v909
      %v960 = vpack.c.bf16 %v914, %v912
      %v961 = vpack.c.bf16 %v915, %v913
      %v962 = vpack.c.bf16 %v918, %v916
      %v963 = vpack.c.bf16 %v919, %v917
      %v964 = vpack.c.bf16 %v922, %v920
      %v965 = vpack.c.bf16 %v923, %v921
      %v966 = vpack.c.bf16 %v926, %v924
      %v967 = vpack.c.bf16 %v927, %v925
      %v968 = vpack.c.bf16 %v930, %v928
      %v969 = vpack.c.bf16 %v931, %v929
      %v970 = vpack.c.bf16 %v934, %v932
      %v971 = vpack.c.bf16 %v935, %v933
      %v972 = vpack.c.bf16 %v938, %v936
      %v973 = vpack.c.bf16 %v939, %v937
      %v974 = vpack.c.bf16 %v942, %v940
      %v975 = vpack.c.bf16 %v943, %v941
      %v1008 = vunpack.c.l.b16 %v944
      %v1009 = vunpack.c.l.b16 %v945
      %v1010 = vunpack.c.h.b16 %v944
      %v1011 = vunpack.c.h.b16 %v945
      %v1012 = vunpack.c.l.b16 %v946
      %v1013 = vunpack.c.l.b16 %v947
      %v1014 = vunpack.c.h.b16 %v946
      %v1015 = vunpack.c.h.b16 %v947
      %v1016 = vunpack.c.l.b16 %v948
      %v1017 = vunpack.c.l.b16 %v949
      %v1018 = vunpack.c.h.b16 %v948
      %v1019 = vunpack.c.h.b16 %v949
      %v1020 = vunpack.c.l.b16 %v950
      %v1021 = vunpack.c.l.b16 %v951
      %v1022 = vunpack.c.h.b16 %v950
      %v1023 = vunpack.c.h.b16 %v951
      %v1024 = vunpack.c.l.b16 %v952
      %v1025 = vunpack.c.l.b16 %v953
      %v1026 = vunpack.c.h.b16 %v952
      %v1027 = vunpack.c.h.b16 %v953
      %v1028 = vunpack.c.l.b16 %v954
      %v1029 = vunpack.c.l.b16 %v955
      %v1030 = vunpack.c.h.b16 %v954
      %v1031 = vunpack.c.h.b16 %v955
      %v1032 = vunpack.c.l.b16 %v956
      %v1033 = vunpack.c.l.b16 %v957
      %v1034 = vunpack.c.h.b16 %v956
      %v1035 = vunpack.c.h.b16 %v957
      %v1036 = vunpack.c.l.b16 %v958
      %v1037 = vunpack.c.l.b16 %v959
      %v1038 = vunpack.c.h.b16 %v958
      %v1039 = vunpack.c.h.b16 %v959
      %v1040 = vunpack.c.l.b16 %v960
      %v1041 = vunpack.c.l.b16 %v961
      %v1042 = vunpack.c.h.b16 %v960
      %v1043 = vunpack.c.h.b16 %v961
      %v1044 = vunpack.c.l.b16 %v962
      %v1045 = vunpack.c.l.b16 %v963
      %v1046 = vunpack.c.h.b16 %v962
      %v1047 = vunpack.c.h.b16 %v963
      %v1048 = vunpack.c.l.b16 %v964
      %v1049 = vunpack.c.l.b16 %v965
      %v1050 = vunpack.c.h.b16 %v964
      %v1051 = vunpack.c.h.b16 %v965
      %v1052 = vunpack.c.l.b16 %v966
      %v1053 = vunpack.c.l.b16 %v967
      %v1054 = vunpack.c.h.b16 %v966
      %v1055 = vunpack.c.h.b16 %v967
      %v1056 = vunpack.c.l.b16 %v968
      %v1057 = vunpack.c.l.b16 %v969
      %v1058 = vunpack.c.h.b16 %v968
      %v1059 = vunpack.c.h.b16 %v969
      %v1060 = vunpack.c.l.b16 %v970
      %v1061 = vunpack.c.l.b16 %v971
      %v1062 = vunpack.c.h.b16 %v970
      %v1063 = vunpack.c.h.b16 %v971
      %v1064 = vunpack.c.l.b16 %v972
      %v1065 = vunpack.c.l.b16 %v973
      %v1066 = vunpack.c.h.b16 %v972
      %v1067 = vunpack.c.h.b16 %v973
      %v1068 = vunpack.c.l.b16 %v974
      %v1069 = vunpack.c.l.b16 %v975
      %v1070 = vunpack.c.h.b16 %v974
      %v1071 = vunpack.c.h.b16 %v975
      %v1072 = vpack.c.b16 %v1009, %v1008
      %v1073 = vpack.c.b16 %v1011, %v1010
      %v1074 = vpack.c.b16 %v1013, %v1012
      %v1075 = vpack.c.b16 %v1015, %v1014
      %v1076 = vpack.c.b16 %v1017, %v1016
      %v1077 = vpack.c.b16 %v1019, %v1018
      %v1078 = vpack.c.b16 %v1021, %v1020
      %v1079 = vpack.c.b16 %v1023, %v1022
      %v1080 = vpack.c.b16 %v1025, %v1024
      %v1081 = vpack.c.b16 %v1027, %v1026
      %v1082 = vpack.c.b16 %v1029, %v1028
      %v1083 = vpack.c.b16 %v1031, %v1030
      %v1084 = vpack.c.b16 %v1033, %v1032
      %v1085 = vpack.c.b16 %v1035, %v1034
      %v1086 = vpack.c.b16 %v1037, %v1036
      %v1087 = vpack.c.b16 %v1039, %v1038
      %v1088 = vpack.c.b16 %v1041, %v1040
      %v1089 = vpack.c.b16 %v1043, %v1042
      %v1090 = vpack.c.b16 %v1045, %v1044
      %v1091 = vpack.c.b16 %v1047, %v1046
      %v1092 = vpack.c.b16 %v1049, %v1048
      %v1093 = vpack.c.b16 %v1051, %v1050
      %v1094 = vpack.c.b16 %v1053, %v1052
      %v1095 = vpack.c.b16 %v1055, %v1054
      %v1096 = vpack.c.b16 %v1057, %v1056
      %v1097 = vpack.c.b16 %v1059, %v1058
      %v1098 = vpack.c.b16 %v1061, %v1060
      %v1099 = vpack.c.b16 %v1063, %v1062
      %v1100 = vpack.c.b16 %v1065, %v1064
      %v1101 = vpack.c.b16 %v1067, %v1066
      %v1102 = vpack.c.b16 %v1069, %v1068
      %v1103 = vpack.c.b16 %v1071, %v1070
      %1136 = vst [vmem:[#allocation8] sm:$0xff] %v1072
      %1137 = vst [vmem:[#allocation8 + $0x8] sm:$0xff] %v1073
      %1138 = vst [vmem:[#allocation8 + $0x10] sm:$0xff] %v1074
      %1139 = vst [vmem:[#allocation8 + $0x18] sm:$0xff] %v1075
      %1140 = vst [vmem:[#allocation8 + $0x20] sm:$0xff] %v1076
      %1141 = vst [vmem:[#allocation8 + $0x28] sm:$0xff] %v1077
      %1142 = vst [vmem:[#allocation8 + $0x30] sm:$0xff] %v1078
      %1143 = vst [vmem:[#allocation8 + $0x38] sm:$0xff] %v1079
      %1144 = vst [vmem:[#allocation8 + $0x40] sm:$0xff] %v1080
      %1145 = vst [vmem:[#allocation8 + $0x48] sm:$0xff] %v1081
      %1146 = vst [vmem:[#allocation8 + $0x50] sm:$0xff] %v1082
      %1147 = vst [vmem:[#allocation8 + $0x58] sm:$0xff] %v1083
      %1148 = vst [vmem:[#allocation8 + $0x60] sm:$0xff] %v1084
      %1149 = vst [vmem:[#allocation8 + $0x68] sm:$0xff] %v1085
      %1150 = vst [vmem:[#allocation8 + $0x70] sm:$0xff] %v1086
      %1151 = vst [vmem:[#allocation8 + $0x78] sm:$0xff] %v1087
      %1152 = vst [vmem:[#allocation8 + $0x80] sm:$0xff] %v1088
      %1153 = vst [vmem:[#allocation8 + $0x88] sm:$0xff] %v1089
      %1154 = vst [vmem:[#allocation8 + $0x90] sm:$0xff] %v1090
      %1155 = vst [vmem:[#allocation8 + $0x98] sm:$0xff] %v1091
      %1156 = vst [vmem:[#allocation8 + $0xa0] sm:$0xff] %v1092
      %1157 = vst [vmem:[#allocation8 + $0xa8] sm:$0xff] %v1093
      %1158 = vst [vmem:[#allocation8 + $0xb0] sm:$0xff] %v1094
      %1159 = vst [vmem:[#allocation8 + $0xb8] sm:$0xff] %v1095
      %1160 = vst [vmem:[#allocation8 + $0xc0] sm:$0xff] %v1096
      %1161 = vst [vmem:[#allocation8 + $0xc8] sm:$0xff] %v1097
      %1162 = vst [vmem:[#allocation8 + $0xd0] sm:$0xff] %v1098
      %1163 = vst [vmem:[#allocation8 + $0xd8] sm:$0xff] %v1099
      %1164 = vst [vmem:[#allocation8 + $0xe0] sm:$0xff] %v1100
      %1165 = vst [vmem:[#allocation8 + $0xe8] sm:$0xff] %v1101
      %1166 = vst [vmem:[#allocation8 + $0xf0] sm:$0xff] %v1102
      %1167 = vst [vmem:[#allocation8 + $0xf8] sm:$0xff] %v1103
    $region25: #{tpu_custom_call.1} parent=1 // pred_fallthru
      _
    // Predicated region
    $region26: #{tpu_custom_call.1} parent=1 // pred_check
      _
    $region27: #{tpu_custom_call.1} parent=1 // pred_check_branch
      %1169 = sbr.rel (0) target = $region29
    $region28: #{tpu_custom_call.1} parent=1 // pred_region
      %s1171 = ssub.s32 4096, 4096
      %1172 = vsyncadd [#allocation5], %s1171
      %s1173 = sshll.u32 [#allocation8], 4
      %s1174 = int_to_ptr.vmem [resolvable:$true] %s1173
      %1179 = dma.vmem_to_hbm [thread:$0]  %s1174, 4096, %s2, [#allocation5], 128, 128, 8
    $region29: #{tpu_custom_call.1} parent=1 // pred_fallthru
      _
    // Predicated region
    $region30: #{tpu_custom_call.1} parent=1 // pred_check
      _
    $region31: #{tpu_custom_call.1} parent=1 // pred_check_branch
      %1181 = sbr.rel (0) target = $region33
    $region32: #{tpu_custom_call.1} parent=1 // pred_region
      %1182 = dma.done [#allocation5], 4096
    $region33: #{tpu_custom_call.1} parent=1 // pred_fallthru
      _
    %1183 = vsyncpa [#allocation4], 1
    %1184 = vsyncpa [#allocation7], 1
    %1185 = vsyncpa [#allocation5], 1

</llo_original>
